<compile_context>
chip_gen: v5e
topology: v5e:2x2
jax: 0.10.0
libtpu: 0.0.40
codegen_flags: <defaults>
</compile_context>

<pallas_src>
import jax
import jax.numpy as jnp
from jax import lax
from jax.experimental import pallas as pl
from jax.experimental.pallas import tpu as pltpu


def _round_up(x, m):
    return (x + m - 1) // m * m


def total_weighted_mse(outputs, targets, num_class,
                       target_vmem_bytes=8 * 1024 * 1024):
    """outputs: (B, num_class, D, H, W); targets: (B, 1, D, H, W) -> float32 loss."""
    B, C, D, H, W = outputs.shape
    assert C == num_class
    S = D * H * W

    o = outputs.reshape(B, C, S)
    t = targets.reshape(B, S)

    # --- choose an S-tile so the double-buffered working set ~ target_vmem_bytes.
    # VMEM rows are sublane-padded to 8, so budget with padded row sizes.
    o_row = 2 * B * _round_up(C, 8) * o.dtype.itemsize      # double-buffered outputs
    t_row = 2 * _round_up(B, 8) * t.dtype.itemsize          # double-buffered targets
    a_row = B * _round_up(C, 8) * 4                         # f32 accumulator tile
    per_lane = o_row + t_row + a_row
    tile_s = max(128, (target_vmem_bytes // per_lane) // 128 * 128)
    if tile_s >= S:
        tile_s = S                                          # single full-extent tile
    num_tiles = -(-S // tile_s)

    # --- megacore split of the S-tile loop (helps v7x; no-op cost elsewhere).
    P = 2 if num_tiles >= 2 else 1
    Tj = -(-num_tiles // P)
    need_mask = (P * Tj * tile_s) != S

    if num_tiles % P == 0:
        def tile_of(p, j):
            return p * Tj + j
    else:
        def tile_of(p, j):                                  # clamp duplicate tail tiles
            return jnp.minimum(p * Tj + j, num_tiles - 1)

    def kernel(out_ref, tgt_ref, loss_ref, acc_ref):
        p = pl.program_id(0)
        j = pl.program_id(1)

        @pl.when(j == 0)
        def _():
            acc_ref[...] = jnp.zeros_like(acc_ref)

        o_blk = out_ref[...].astype(jnp.float32)            # (B, C, tile_s)
        t_blk = tgt_ref[...].astype(jnp.float32)            # (B, tile_s)
        d = jnp.maximum(o_blk - t_blk[:, None, :], 0.0)     # clamp(out - tgt, min=0)
        sq = d * d

        if need_mask:                                       # static (trace-time) flag
            start = (p * Tj + j) * tile_s
            lane = lax.broadcasted_iota(jnp.int32, (1, 1, tile_s), 2)
            sq = jnp.where(start + lane < S, sq, 0.0)

        acc_ref[...] += sq                                  # pure-VPU running partials

        @pl.when(j == pl.num_programs(1) - 1)
        def _():                                            # epilogue-only reduce+store
            loss_ref[...] = jnp.sum(acc_ref[...]).reshape(1, 1, 1)

    partials = pl.pallas_call(
        kernel,
        out_shape=jax.ShapeDtypeStruct((P, 1, 1), jnp.float32),
        grid_spec=pltpu.PrefetchScalarGridSpec(
            num_scalar_prefetch=0,
            grid=(P, Tj),
            in_specs=[
                pl.BlockSpec((B, C, tile_s), lambda p, j: (0, 0, tile_of(p, j))),
                pl.BlockSpec((B, tile_s), lambda p, j: (0, tile_of(p, j))),
            ],
            out_specs=pl.BlockSpec((1, 1, 1), lambda p, j: (p, 0, 0)),
            scratch_shapes=[pltpu.VMEM((B, C, tile_s), jnp.float32)],
        ),
        compiler_params=pltpu.CompilerParams(
            dimension_semantics=("parallel", "arbitrary"),
            vmem_limit_bytes=32 * 1024 * 1024,
        ),
    )(o, t)

    # Each per-class WeightedMSE is a mean over B*S elements; summing the C
    # class losses == (global sum of squared clamped diffs) / (B * S).
    return jnp.sum(partials) / jnp.float32(B * S)


if __name__ == "__main__":
    key = jax.random.PRNGKey(0)
    k1, k2 = jax.random.split(key)

    B, C, D, H, W = 2, 4, 4, 16, 16          # batch=2, num_class=4, small 3D volume
    outputs = jax.random.normal(k1, (B, C, D, H, W), dtype=jnp.float32)
    targets = (jax.random.uniform(k2, (B, 1, D, H, W)) > 0.5).astype(jnp.float32)

    loss = total_weighted_mse(outputs, targets, num_class=C)
    jax.block_until_ready(loss)

    # Pure-JAX reference of the exact PyTorch semantics.
    diff2 = jnp.maximum(outputs - targets, 0.0) ** 2           # (B, C, D, H, W)
    ref = jnp.sum(jnp.mean(diff2.reshape(B, C, -1), axis=(0, 2)))

    assert jnp.allclose(loss, ref, rtol=1e-5, atol=1e-5), (loss, ref)
    print("KERNEL_OK")
</pallas_src>

<mosaic_0001>
module attributes {stable_mosaic.version = 11 : i64} {
  func.func @kernel(%arg0: i32, %arg1: i32, %arg2: memref<2x4x1024xf32, #tpu.memory_space<vmem>>, %arg3: memref<2x1024xf32, #tpu.memory_space<vmem>>, %arg4: memref<1x1x1xf32, #tpu.memory_space<vmem>>, %arg5: memref<2x4x1024xf32, #tpu.memory_space<vmem>>) attributes {dimension_semantics = [#tpu.dimension_semantics<parallel>, #tpu.dimension_semantics<arbitrary>], iteration_bounds = array<i64: 1, 1>, scalar_prefetch = 0 : i64, scratch_operands = 1 : i64, tpu.core_type = #tpu.core_type<tc>, window_params = [{transform_indices = @transform_0, window_bounds = array<i64: 2, 4, 1024>}, {transform_indices = @transform_1, window_bounds = array<i64: 2, 1024>}, {transform_indices = @transform_2, window_bounds = array<i64: 1, 1, 1>}]} {
    %c0_i32 = arith.constant 0 : i32
    %0 = arith.cmpi eq, %arg1, %c0_i32 : i32
    %1 = arith.extui %0 : i1 to i32
    %c0_i32_0 = arith.constant 0 : i32
    %2 = arith.cmpi ne, %1, %c0_i32_0 : i32
    scf.if %2 {
      %cst_13 = arith.constant 0.000000e+00 : f32
      %17 = vector.broadcast %cst_13 : f32 to vector<2x4x1024xf32>
      %c0_14 = arith.constant 0 : index
      %c0_15 = arith.constant 0 : index
      %c0_16 = arith.constant 0 : index
      %18 = vector.load %arg5[%c0_14, %c0_15, %c0_16] : memref<2x4x1024xf32, #tpu.memory_space<vmem>>, vector<2x4x1024xf32>
      tpu.vector_store %arg5[%c0_14, %c0_15, %c0_16], %17 {strides = array<i32>} : memref<2x4x1024xf32, #tpu.memory_space<vmem>>, vector<2x4x1024xf32>,
    } else {
    }
    %c0 = arith.constant 0 : index
    %c0_1 = arith.constant 0 : index
    %c0_2 = arith.constant 0 : index
    %3 = vector.load %arg2[%c0, %c0_1, %c0_2] : memref<2x4x1024xf32, #tpu.memory_space<vmem>>, vector<2x4x1024xf32>
    %c0_3 = arith.constant 0 : index
    %c0_4 = arith.constant 0 : index
    %4 = vector.load %arg3[%c0_3, %c0_4] : memref<2x1024xf32, #tpu.memory_space<vmem>>, vector<2x1024xf32>
    %5 = vector.shape_cast %4 : vector<2x1024xf32> to vector<2x1x1024xf32>
    %6 = vector.broadcast %5 : vector<2x1x1024xf32> to vector<2x4x1024xf32>
    %7 = arith.subf %3, %6 : vector<2x4x1024xf32>
    %cst = arith.constant 0.000000e+00 : f32
    %8 = vector.broadcast %cst : f32 to vector<2x4x1024xf32>
    %9 = arith.maximumf %7, %8 : vector<2x4x1024xf32>
    %10 = arith.mulf %9, %9 : vector<2x4x1024xf32>
    %c0_5 = arith.constant 0 : index
    %c0_6 = arith.constant 0 : index
    %c0_7 = arith.constant 0 : index
    %11 = vector.load %arg5[%c0_5, %c0_6, %c0_7] : memref<2x4x1024xf32, #tpu.memory_space<vmem>>, vector<2x4x1024xf32>
    %12 = arith.addf %11, %10 : vector<2x4x1024xf32>
    %c0_8 = arith.constant 0 : index
    %c0_9 = arith.constant 0 : index
    %c0_10 = arith.constant 0 : index
    %13 = vector.load %arg5[%c0_8, %c0_9, %c0_10] : memref<2x4x1024xf32, #tpu.memory_space<vmem>>, vector<2x4x1024xf32>
    tpu.vector_store %arg5[%c0_8, %c0_9, %c0_10], %12 {strides = array<i32>} : memref<2x4x1024xf32, #tpu.memory_space<vmem>>, vector<2x4x1024xf32>,
    %c0_i32_11 = arith.constant 0 : i32
    %14 = arith.cmpi eq, %arg1, %c0_i32_11 : i32
    %15 = arith.extui %14 : i1 to i32
    %c0_i32_12 = arith.constant 0 : i32
    %16 = arith.cmpi ne, %15, %c0_i32_12 : i32
    scf.if %16 {
      %c0_13 = arith.constant 0 : index
      %c0_14 = arith.constant 0 : index
      %c0_15 = arith.constant 0 : index
      %17 = vector.load %arg5[%c0_13, %c0_14, %c0_15] : memref<2x4x1024xf32, #tpu.memory_space<vmem>>, vector<2x4x1024xf32>
      %18 = vector.shape_cast %17 : vector<2x4x1024xf32> to vector<1x2x4x1024xf32>
      %cst_16 = arith.constant dense<0.000000e+00> : vector<1xf32>
      %19 = vector.multi_reduction <add>, %18, %cst_16 [1, 2, 3] : vector<1x2x4x1024xf32> to vector<1xf32>
      %20 = vector.shape_cast %19 : vector<1xf32> to vector<1x1x1x1xf32>
      %21 = vector.extract %20[0, 0, 0, 0] : f32 from vector<1x1x1x1xf32>
      %22 = vector.broadcast %21 : f32 to vector<1x1x1xf32>
      %c0_17 = arith.constant 0 : index
      %c0_18 = arith.constant 0 : index
      %c0_19 = arith.constant 0 : index
      %23 = vector.load %arg4[%c0_17, %c0_18, %c0_19] : memref<1x1x1xf32, #tpu.memory_space<vmem>>, vector<1x1x1xf32>
      tpu.vector_store %arg4[%c0_17, %c0_18, %c0_19], %22 {strides = array<i32>} : memref<1x1x1xf32, #tpu.memory_space<vmem>>, vector<1x1x1xf32>,
    } else {
    }
    return
  }
  func.func @transform_0(%arg0: i32, %arg1: i32) -> (i32, i32, i32) {
    %c1_i32 = arith.constant 1 : i32
    %0 = arith.muli %arg0, %c1_i32 : i32
    %1 = arith.addi %0, %arg1 : i32
    %c0_i32 = arith.constant 0 : i32
    %c0_i32_0 = arith.constant 0 : i32
    %c0_i32_1 = arith.constant 0 : i32
    return %c0_i32, %c0_i32_0, %1 : i32, i32, i32
  }
  func.func @transform_1(%arg0: i32, %arg1: i32) -> (i32, i32) {
    %c1_i32 = arith.constant 1 : i32
    %0 = arith.muli %arg0, %c1_i32 : i32
    %1 = arith.addi %0, %arg1 : i32
    %c0_i32 = arith.constant 0 : i32
    %c0_i32_0 = arith.constant 0 : i32
    return %c0_i32, %1 : i32, i32
  }
  func.func @transform_2(%arg0: i32, %arg1: i32) -> (i32, i32, i32) {
    %c0_i32 = arith.constant 0 : i32
    %c0_i32_0 = arith.constant 0 : i32
    %c0_i32_1 = arith.constant 0 : i32
    return %arg0, %c0_i32, %c0_i32_0 : i32, i32, i32
  }
}

</mosaic_0001>

<llo_original>
// kernel: tpu_custom_call.1
$region0: #{tpu_custom_call.1}
  #allocation0 [shape = 'u32[]', space=smem, size = 0x4, offset = 0x4, fixed_abs, tag = 'smem constant byte address 0x4 - core index']
  #allocation1 [shape = 'u32[72,128]{1,0:T(1,128)}', space=vmem, size = 0x9000, scoped, tag = 'internal scratch']
  #allocation2 [shape = 'f32[2,4,1024]{2,1,0:T(4,128)}', space=vmem, size = 0x8000, scoped, tag = 'scratch operand']
  %s0 = inlined_call_operand.hbm [shape: f32[2,4,1024], index: 0, kind: input, shape index: {}]
  %s1 = inlined_call_operand.hbm [shape: f32[2,1024], index: 1, kind: input, shape index: {}]
  %s2 = inlined_call_operand.hbm [shape: f32[1,1,1], index: 2, kind: output, shape index: {}]
  %s3 = sld [smem:[#allocation0]]
  $region34: #{tpu_custom_call.1} parent=0
    _
  %s5 = ssub.s32 1, %s3
  %s6 = scalar_select 0, %s5, %s3
  $region1: #{tpu_custom_call.1} parent=0
    #allocation3 [shape = 'u8[32768]{0}', space=vmem, size = 0x8000, scoped, tag = 'input window, operand 0, single buffered']
    #allocation4 [shape = 's32[1]{0}', space=sflag, size = 0x4, scoped, tag = 'scoped memory for tpu_custom_call.1']
    #allocation5 [shape = 's32[1]{0}', space=sflag, size = 0x4, scoped, tag = 'scoped memory for tpu_custom_call.1']
    #allocation6 [shape = 'u8[8192]{0}', space=vmem, size = 0x2000, scoped, tag = 'input window, operand 1, single buffered']
    #allocation7 [shape = 's32[1]{0}', space=sflag, size = 0x4, scoped, tag = 'scoped memory for tpu_custom_call.1']
    #allocation8 [shape = 'u8[512]{0}', space=vmem, size = 0x400, scoped, tag = 'output window, operand 0, single buffered']
    %7 = vsyncpa [#allocation4], 0
    %8 = vsyncpa [#allocation7], 0
    %9 = vsyncpa [#allocation5], 0
    // Predicated region
    $region2: #{tpu_custom_call.1} parent=1 // pred_check
      _
    $region3: #{tpu_custom_call.1} parent=1 // pred_check_branch
      %11 = sbr.rel (0) target = $region5
    $region4: #{tpu_custom_call.1} parent=1 // pred_region
      %s12 = sadd.s32 0, 0
      %s13 = smul.u32 8, %s12
      %15 = vsyncadd [#allocation4], 0
      %s16 = smul.addr %s13, 4
      %s17 = scalar_lea.hbm %s0, %s16
      %s18 = sshll.u32 %s17, 4
      %s19 = int_to_ptr.hbm [resolvable:$true] %s18
      %s20 = sshll.u32 [#allocation3], 4
      %s21 = int_to_ptr.vmem [resolvable:$true] %s20
      %26 = dma.hbm_to_vmem [thread:$0]  %s19, 1024, %s21, [#allocation4], 512, 512, 32
    $region5: #{tpu_custom_call.1} parent=1 // pred_fallthru
      _
    // Predicated region
    $region6: #{tpu_custom_call.1} parent=1 // pred_check
      _
    $region7: #{tpu_custom_call.1} parent=1 // pred_check_branch
      %28 = sbr.rel (0) target = $region9
    $region8: #{tpu_custom_call.1} parent=1 // pred_region
      %s29 = sadd.s32 0, 0
      %s30 = smul.u32 8, %s29
      %32 = vsyncadd [#allocation7], 0
      %s33 = smul.addr %s30, 2
      %s34 = scalar_lea.hbm %s1, %s33
      %s36 = sshll.u32 %s34, 4
      %s37 = int_to_ptr.hbm [resolvable:$true] %s36
      %s38 = sshll.u32 [#allocation6], 4
      %s39 = int_to_ptr.vmem [resolvable:$true] %s38
      %41 = dma.hbm_to_vmem [thread:$0]  %s37, 256, %s39, [#allocation7]
    $region9: #{tpu_custom_call.1} parent=1 // pred_fallthru
      _
    // Predicated region
    $region10: #{tpu_custom_call.1} parent=1 // pred_check
      _
    $region11: #{tpu_custom_call.1} parent=1 // pred_check_branch
      %43 = sbr.rel (0) target = $region13
    $region12: #{tpu_custom_call.1} parent=1 // pred_region
      %45 = dma.done [#allocation4], 1024
    $region13: #{tpu_custom_call.1} parent=1 // pred_fallthru
      _
    // Predicated region
    $region14: #{tpu_custom_call.1} parent=1 // pred_check
      _
    $region15: #{tpu_custom_call.1} parent=1 // pred_check_branch
      %47 = sbr.rel (0) target = $region17
    $region16: #{tpu_custom_call.1} parent=1 // pred_region
      %49 = dma.done [#allocation7], 256
    $region17: #{tpu_custom_call.1} parent=1 // pred_fallthru
      _
    %s50 = sadd.s32 0, 0
    %s51 = smul.u32 8, %s50
    %s52 = sadd.s32 0, 0
    %s53 = smul.u32 8, %s52
    %p54 = scmp.eq.s32.totalorder 0, 0
    // Predicated region
    $region18: #{tpu_custom_call.1} parent=1 // pred_check
      %p55 = pneg %p54
    $region19: #{tpu_custom_call.1} parent=1 // pred_check_branch
      %57 = sbr.rel (%p55) target = $region21
    $region20: #{tpu_custom_call.1} parent=1 // pred_region
      %58 = vst [vmem:[#allocation2] sm:$0xff] 0.0
      %59 = vst [vmem:[#allocation2 + $0x8] sm:$0xff] 0.0
      %60 = vst [vmem:[#allocation2 + $0x10] sm:$0xff] 0.0
      %61 = vst [vmem:[#allocation2 + $0x18] sm:$0xff] 0.0
      %62 = vst [vmem:[#allocation2 + $0x20] sm:$0xff] 0.0
      %63 = vst [vmem:[#allocation2 + $0x28] sm:$0xff] 0.0
      %64 = vst [vmem:[#allocation2 + $0x30] sm:$0xff] 0.0
      %65 = vst [vmem:[#allocation2 + $0x38] sm:$0xff] 0.0
    $region21: #{tpu_custom_call.1} parent=1 // pred_fallthru
      _
    %v66 = vld [vmem:[#allocation3] sm:$0xff]
    %v67 = vld [vmem:[#allocation3 + $0x8] sm:$0xff]
    %v68 = vld [vmem:[#allocation3 + $0x10] sm:$0xff]
    %v69 = vld [vmem:[#allocation3 + $0x18] sm:$0xff]
    %v70 = vld [vmem:[#allocation3 + $0x20] sm:$0xff]
    %v71 = vld [vmem:[#allocation3 + $0x28] sm:$0xff]
    %v72 = vld [vmem:[#allocation3 + $0x30] sm:$0xff]
    %v73 = vld [vmem:[#allocation3 + $0x38] sm:$0xff]
    %v74 = vld [vmem:[#allocation6] sm:$0xff]
    %v75 = vld [vmem:[#allocation6 + $0x8] sm:$0xff]
    %v78 = vrot.slane %v74, 1
    %v79 = vrot.slane %v74, 2
    %v80 = vrot.slane %v74, 3
    %v81 = vrot.slane %v75, 4
    %v82 = vrot.slane %v75, 5
    %v83 = vrot.slane %v75, 6
    %v84 = vrot.slane %v75, 7
    %vm85 = vcmask 1040384
    %v86 = vsel %vm85, %v74, %v78
    %vm87 = vcmask 1042434
    %v88 = vsel %vm87, %v79, %v80
    %vm89 = vcmask 1041408
    %v90 = vsel %vm89, %v86, %v88
    %vm91 = vcmask 1044484
    %v92 = vsel %vm91, %v81, %v82
    %vm93 = vcmask 1046534
    %v94 = vsel %vm93, %v83, %v84
    %vm95 = vcmask 1045508
    %v96 = vsel %vm95, %v92, %v94
    %vm97 = vcmask 1043456
    %v98 = vsel %vm97, %v90, %v96
    %vm99 = vcmask 1041409
    %v100 = vsel %vm99, %v74, %v78
    %vm101 = vcmask 1043459
    %v102 = vsel %vm101, %v79, %v80
    %vm103 = vcmask 1042433
    %v104 = vsel %vm103, %v100, %v102
    %vm105 = vcmask 1045509
    %v106 = vsel %vm105, %v81, %v82
    %vm107 = vcmask 1046528
    %v108 = vsel %vm107, %v84, %v83
    %vm109 = vcmask 1046533
    %v110 = vsel %vm109, %v106, %v108
    %vm111 = vcmask 1044481
    %v112 = vsel %vm111, %v104, %v110
    %v113 = vrot.slane %v112, 1
    %v114 = vperm.slane %v98, 0
    %v115 = vperm.slane %v98, 1
    %v116 = vperm.slane %v98, 2
    %v117 = vperm.slane %v98, 3
    %v118 = vperm.slane %v98, 4
    %v119 = vperm.slane %v98, 5
    %v120 = vperm.slane %v98, 6
    %v121 = vperm.slane %v98, 7
    %v122 = vperm.slane %v113, 0
    %v123 = vperm.slane %v113, 1
    %v124 = vperm.slane %v113, 2
    %v125 = vperm.slane %v113, 3
    %v126 = vperm.slane %v113, 4
    %v127 = vperm.slane %v113, 5
    %v128 = vperm.slane %v113, 6
    %v129 = vperm.slane %v113, 7
    %v130 = vrot.slane %v115, 4
    %v131 = vrot.slane %v117, 4
    %v132 = vrot.slane %v119, 4
    %v133 = vrot.slane %v121, 4
    %v134 = vrot.slane %v123, 4
    %v135 = vrot.slane %v125, 4
    %v136 = vrot.slane %v127, 4
    %v137 = vrot.slane %v129, 4
    %v138 = vsel %vm97, %v114, %v130
    %v139 = vsel %vm97, %v116, %v131
    %v140 = vsel %vm97, %v118, %v132
    %v141 = vsel %vm97, %v120, %v133
    %v142 = vsel %vm97, %v122, %v134
    %v143 = vsel %vm97, %v124, %v135
    %v144 = vsel %vm97, %v126, %v136
    %v145 = vsel %vm97, %v128, %v137
    %v154 = vsub.f32 %v66, %v138
    %v155 = vsub.f32 %v67, %v139
    %v156 = vsub.f32 %v68, %v140
    %v157 = vsub.f32 %v69, %v141
    %v158 = vsub.f32 %v70, %v142
    %v159 = vsub.f32 %v71, %v143
    %v160 = vsub.f32 %v72, %v144
    %v161 = vsub.f32 %v73, %v145
    %v162 = vmax.f32 %v154, 0.0
    %v163 = vmax.f32 %v155, 0.0
    %v164 = vmax.f32 %v156, 0.0
    %v165 = vmax.f32 %v157, 0.0
    %v166 = vmax.f32 %v158, 0.0
    %v167 = vmax.f32 %v159, 0.0
    %v168 = vmax.f32 %v160, 0.0
    %v169 = vmax.f32 %v161, 0.0
    %v170 = vmul.f32 %v162, %v162
    %v171 = vmul.f32 %v163, %v163
    %v172 = vmul.f32 %v164, %v164
    %v173 = vmul.f32 %v165, %v165
    %v174 = vmul.f32 %v166, %v166
    %v175 = vmul.f32 %v167, %v167
    %v176 = vmul.f32 %v168, %v168
    %v177 = vmul.f32 %v169, %v169
    %v178 = vld [vmem:[#allocation2] sm:$0xff]
    %v179 = vld [vmem:[#allocation2 + $0x8] sm:$0xff]
    %v180 = vld [vmem:[#allocation2 + $0x10] sm:$0xff]
    %v181 = vld [vmem:[#allocation2 + $0x18] sm:$0xff]
    %v182 = vld [vmem:[#allocation2 + $0x20] sm:$0xff]
    %v183 = vld [vmem:[#allocation2 + $0x28] sm:$0xff]
    %v184 = vld [vmem:[#allocation2 + $0x30] sm:$0xff]
    %v185 = vld [vmem:[#allocation2 + $0x38] sm:$0xff]
    %v186 = vadd.f32 %v178, %v170
    %v187 = vadd.f32 %v179, %v171
    %v188 = vadd.f32 %v180, %v172
    %v189 = vadd.f32 %v181, %v173
    %v190 = vadd.f32 %v182, %v174
    %v191 = vadd.f32 %v183, %v175
    %v192 = vadd.f32 %v184, %v176
    %v193 = vadd.f32 %v185, %v177
    %194 = vst [vmem:[#allocation2] sm:$0xff] %v186
    %195 = vst [vmem:[#allocation2 + $0x8] sm:$0xff] %v187
    %196 = vst [vmem:[#allocation2 + $0x10] sm:$0xff] %v188
    %197 = vst [vmem:[#allocation2 + $0x18] sm:$0xff] %v189
    %198 = vst [vmem:[#allocation2 + $0x20] sm:$0xff] %v190
    %199 = vst [vmem:[#allocation2 + $0x28] sm:$0xff] %v191
    %200 = vst [vmem:[#allocation2 + $0x30] sm:$0xff] %v192
    %201 = vst [vmem:[#allocation2 + $0x38] sm:$0xff] %v193
    // Predicated region
    $region22: #{tpu_custom_call.1} parent=1 // pred_check
      %p202 = pneg %p54
    $region23: #{tpu_custom_call.1} parent=1 // pred_check_branch
      %204 = sbr.rel (%p202) target = $region25
    $region24: #{tpu_custom_call.1} parent=1 // pred_region
      %v205 = vld [vmem:[#allocation2] sm:$0xff]
      %v206 = vld [vmem:[#allocation2 + $0x8] sm:$0xff]
      %v207 = vld [vmem:[#allocation2 + $0x10] sm:$0xff]
      %v208 = vld [vmem:[#allocation2 + $0x18] sm:$0xff]
      %v209 = vld [vmem:[#allocation2 + $0x20] sm:$0xff]
      %v210 = vld [vmem:[#allocation2 + $0x28] sm:$0xff]
      %v211 = vld [vmem:[#allocation2 + $0x30] sm:$0xff]
      %v212 = vld [vmem:[#allocation2 + $0x38] sm:$0xff]
      %221 = vst [vmem:[#allocation1] ss:$2 sm:$0xff] %v205
      %s222 = scalar_lea.vmem [#allocation1], 16
      %223 = vst [vmem:[%s222] ss:$2 sm:$0xff] %v206
      %s224 = scalar_lea.vmem [#allocation1], 32
      %225 = vst [vmem:[%s224] ss:$2 sm:$0xff] %v207
      %s226 = scalar_lea.vmem [#allocation1], 48
      %227 = vst [vmem:[%s226] ss:$2 sm:$0xff] %v208
      %v228 = vld.sshfl [vmem:[#allocation1] sm:$0xff pattern:$0x75316420]
      %v229 = vld.sshfl [vmem:[#allocation1 + $0x8] sm:$0xff pattern:$0x75316420]
      %v230 = vld.sshfl [vmem:[#allocation1 + $0x10] sm:$0xff pattern:$0x75316420]
      %v231 = vld.sshfl [vmem:[#allocation1 + $0x18] sm:$0xff pattern:$0x75316420]
      %v232 = vld.sshfl [vmem:[#allocation1 + $0x20] sm:$0xff pattern:$0x75316420]
      %v233 = vld.sshfl [vmem:[#allocation1 + $0x28] sm:$0xff pattern:$0x75316420]
      %v234 = vld.sshfl [vmem:[#allocation1 + $0x30] sm:$0xff pattern:$0x75316420]
      %v235 = vld.sshfl [vmem:[#allocation1 + $0x38] sm:$0xff pattern:$0x75316420]
      %236 = vst [vmem:[#allocation1] ss:$2 sm:$0xff] %v209
      %237 = vst [vmem:[%s222] ss:$2 sm:$0xff] %v210
      %238 = vst [vmem:[%s224] ss:$2 sm:$0xff] %v211
      %239 = vst [vmem:[%s226] ss:$2 sm:$0xff] %v212
      %v240 = vld.sshfl [vmem:[#allocation1] sm:$0xff pattern:$0x75316420]
      %v241 = vld.sshfl [vmem:[#allocation1 + $0x8] sm:$0xff pattern:$0x75316420]
      %v242 = vld.sshfl [vmem:[#allocation1 + $0x10] sm:$0xff pattern:$0x75316420]
      %v243 = vld.sshfl [vmem:[#allocation1 + $0x18] sm:$0xff pattern:$0x75316420]
      %v244 = vld.sshfl [vmem:[#allocation1 + $0x20] sm:$0xff pattern:$0x75316420]
      %v245 = vld.sshfl [vmem:[#allocation1 + $0x28] sm:$0xff pattern:$0x75316420]
      %v246 = vld.sshfl [vmem:[#allocation1 + $0x30] sm:$0xff pattern:$0x75316420]
      %v247 = vld.sshfl [vmem:[#allocation1 + $0x38] sm:$0xff pattern:$0x75316420]
      %v264 = vsel %vm97, %v228, 0.0
      %v265 = vsel %vm97, %v229, 0.0
      %v266 = vadd.f32 %v264, %v265
      %v267 = vsel %vm97, %v230, 0.0
      %v268 = vadd.f32 %v266, %v267
      %v269 = vsel %vm97, %v231, 0.0
      %v270 = vadd.f32 %v268, %v269
      %v271 = vsel %vm97, %v232, 0.0
      %v272 = vadd.f32 %v270, %v271
      %v273 = vsel %vm97, %v233, 0.0
      %v274 = vadd.f32 %v272, %v273
      %v275 = vsel %vm97, %v234, 0.0
      %v276 = vadd.f32 %v274, %v275
      %v277 = vsel %vm97, %v235, 0.0
      %v278 = vadd.f32 %v276, %v277
      %v279 = vsel %vm97, %v240, 0.0
      %v280 = vadd.f32 %v278, %v279
      %v281 = vsel %vm97, %v241, 0.0
      %v282 = vadd.f32 %v280, %v281
      %v283 = vsel %vm97, %v242, 0.0
      %v284 = vadd.f32 %v282, %v283
      %v285 = vsel %vm97, %v243, 0.0
      %v286 = vadd.f32 %v284, %v285
      %v287 = vsel %vm97, %v244, 0.0
      %v288 = vadd.f32 %v286, %v287
      %v289 = vsel %vm97, %v245, 0.0
      %v290 = vadd.f32 %v288, %v289
      %v291 = vsel %vm97, %v246, 0.0
      %v292 = vadd.f32 %v290, %v291
      %v293 = vsel %vm97, %v247, 0.0
      %v294 = vadd.f32 %v292, %v293
      %295 = vadd.xlane.f32.xlu0 %v294
      %v296 = vpop.xlane.xlu0 %295
      %v297 = vrot.slane %v296, 4
      %v298 = vadd.f32 %v296, %v297
      %v299 = vrot.slane %v298, 2
      %v300 = vadd.f32 %v298, %v299
      %v301 = vrot.slane %v300, 1
      %v302 = vadd.f32 %v300, %v301
      %s303 = vtos %v302
      %v304 = vstv %s303
      %vm305 = vcmask 0
      %306 = vst.msk [vmem:[#allocation8] sm:$0x1] %vm305, %v304
    $region25: #{tpu_custom_call.1} parent=1 // pred_fallthru
      _
    // Predicated region
    $region26: #{tpu_custom_call.1} parent=1 // pred_check
      _
    $region27: #{tpu_custom_call.1} parent=1 // pred_check_branch
      %308 = sbr.rel (0) target = $region29
    $region28: #{tpu_custom_call.1} parent=1 // pred_region
      %310 = vsyncadd [#allocation5], 0
      %s312 = sshll.u32 [#allocation8], 4
      %s313 = int_to_ptr.vmem [resolvable:$true] %s312
      %s314 = sshll.u32 %s2, 4
      %s315 = int_to_ptr.hbm [resolvable:$true] %s314
      %317 = dma.vmem_to_hbm [thread:$0]  %s313, 16, %s315, [#allocation5]
    $region29: #{tpu_custom_call.1} parent=1 // pred_fallthru
      _
    // Predicated region
    $region30: #{tpu_custom_call.1} parent=1 // pred_check
      _
    $region31: #{tpu_custom_call.1} parent=1 // pred_check_branch
      %319 = sbr.rel (0) target = $region33
    $region32: #{tpu_custom_call.1} parent=1 // pred_region
      %321 = dma.done [#allocation5], 16
    $region33: #{tpu_custom_call.1} parent=1 // pred_fallthru
      _
    %322 = vsyncpa [#allocation4], 1
    %323 = vsyncpa [#allocation7], 1
    %324 = vsyncpa [#allocation5], 1

</llo_original>
